<compile_context>
chip_gen: v5e
topology: v5e:2x2
jax: 0.10.0
libtpu: 0.0.40
codegen_flags: <defaults>
</compile_context>

<pallas_src>
import functools

import jax
import jax.numpy as jnp
from jax.experimental import pallas as pl
from jax.experimental.pallas import tpu as pltpu


# --------------------------------------------------------------------------
# Kernel
# --------------------------------------------------------------------------
def actor_kernel(s_ref, w1_ref, b1_ref, w2_ref, b2_ref, w3_ref, b3_ref,
                 o_ref, *, max_action):
    # fc1: in-kernel f32->bf16 cast of the streamed state (a handful of VPU
    # pack ops on a non-saturated slot), bf16 x bf16 -> f32 MXU accumulation.
    x = jnp.dot(s_ref[...].astype(w1_ref.dtype), w1_ref[...],
                preferred_element_type=jnp.float32)
    x = jnp.maximum(x + b1_ref[...], 0.0)

    # fc2: cast activation to the weight dtype (bf16) for the MXU feed only.
    x = jnp.dot(x.astype(w2_ref.dtype), w2_ref[...],
                preferred_element_type=jnp.float32)
    x = jnp.maximum(x + b2_ref[...], 0.0)

    # fc_out + tanh * max_action, epilogue in f32.
    x = jnp.dot(x.astype(w3_ref.dtype), w3_ref[...],
                preferred_element_type=jnp.float32)
    o_ref[...] = (jnp.tanh(x + b3_ref[...]) * max_action).astype(o_ref.dtype)


# --------------------------------------------------------------------------
# Wrapper
# --------------------------------------------------------------------------
def _pick_batch_tile(B):
    """Largest batch tile <= 2048 (per-step VMEM ~10 MB at 2048, inside
    v5e's 16 MiB scoped default and far under v6e/v7x limits) that gives an
    EVEN grid >= 2 whenever B >= 16, so both v7x TensorCores stay busy and
    balanced. Tiny batches (< 16 rows) run as one full-batch block."""
    if B < 16:
        return B
    cap = 2048
    n_tiles = max(2, 2 * (-(-B // (2 * cap))))   # even tile count
    tb = -(-B // n_tiles)                        # ceil(B / n_tiles)
    tb = -(-tb // 8) * 8                         # round up to sublane multiple
    return min(tb, cap)


def actor_forward(state, params, max_action, *, batch_tile=None):
    """state: (B, state_dim) f32.  params: transposed weights (in,out) bf16
    + row biases f32.  Returns (B, action_dim) f32 actions."""
    w1, b1 = params["w1"], params["b1"]   # (state_dim, 256) bf16, (1, 256) f32
    w2, b2 = params["w2"], params["b2"]   # (256, 128)       bf16, (1, 128) f32
    w3, b3 = params["w3"], params["b3"]   # (128, action_dim)bf16, (1, act) f32

    B, state_dim = state.shape
    action_dim = w3.shape[1]

    tb = _pick_batch_tile(B) if batch_tile is None else int(batch_tile)
    if tb >= B:
        tb = B                      # single full-batch block (grid = 1)
    else:
        # (8,128) rule: a non-full-dim second-to-last block dim must be a
        # multiple of 8 for f32/bf16 sublanes.
        assert tb % 8 == 0, "batch_tile must be a multiple of 8 (or >= B)"

    # Ragged batches: no jnp.pad / output slice. The last (partial) tile is
    # handled by Pallas' block masking -- rows past B are read as padding and
    # never written back, and they only affect their own (discarded) rows.
    n_tiles = pl.cdiv(B, tb)

    kernel = functools.partial(actor_kernel, max_action=float(max_action))
    # Weights/biases: constant index maps -> fetched once, resident in VMEM
    # across all grid steps (no per-step re-DMA).
    full = lambda shape: pl.BlockSpec(shape, lambda i: (0, 0))

    return pl.pallas_call(
        kernel,
        out_shape=jax.ShapeDtypeStruct((B, action_dim), jnp.float32),
        grid_spec=pltpu.PrefetchScalarGridSpec(
            num_scalar_prefetch=0,
            grid=(n_tiles,),
            in_specs=[
                # Streamed f32 state tile (cast to bf16 inside the kernel).
                pl.BlockSpec((tb, state_dim), lambda i: (i, 0)),
                full(w1.shape), full(b1.shape),
                full(w2.shape), full(b2.shape),
                full(w3.shape), full(b3.shape),
            ],
            out_specs=pl.BlockSpec((tb, action_dim), lambda i: (i, 0)),
        ),
        compiler_params=pltpu.CompilerParams(
            dimension_semantics=("parallel",)),
        # tb <= 2048 keeps per-step VMEM ~10 MB: under v5e's 16 MiB scoped
        # default, so no explicit vmem_limit_bytes is needed on any gen.
    )(state, w1, b1, w2, b2, w3, b3)


# --------------------------------------------------------------------------
# Params + references
# --------------------------------------------------------------------------
def init_actor_params(key, state_dim, action_dim, *, param_dtype=jnp.bfloat16):
    """Deterministic synthetic init (PyTorch-Linear-like uniform ranges).
    Weights stored pre-transposed (in, out) in bf16; biases kept f32."""
    def linear(k, fan_in, fan_out):
        kw, kb = jax.random.split(k)
        bound = 1.0 / jnp.sqrt(fan_in)
        w = jax.random.uniform(kw, (fan_in, fan_out), jnp.float32, -bound, bound)
        b = jax.random.uniform(kb, (1, fan_out), jnp.float32, -bound, bound)
        return w.astype(param_dtype), b

    k1, k2, k3 = jax.random.split(key, 3)
    w1, b1 = linear(k1, state_dim, 256)
    w2, b2 = linear(k2, 256, 128)
    w3, b3 = linear(k3, 128, action_dim)
    return {"w1": w1, "b1": b1, "w2": w2, "b2": b2, "w3": w3, "b3": b3}


def actor_ref(state, params, max_action):
    """Pure-JAX reference mirroring the kernel's dtype flow
    (bf16 dot inputs, f32 accumulation, f32 elementwise)."""
    x = state.astype(params["w1"].dtype)
    x = jnp.dot(x, params["w1"], preferred_element_type=jnp.float32) + params["b1"]
    x = jnp.maximum(x, 0.0)
    x = jnp.dot(x.astype(params["w2"].dtype), params["w2"],
                preferred_element_type=jnp.float32) + params["b2"]
    x = jnp.maximum(x, 0.0)
    x = jnp.dot(x.astype(params["w3"].dtype), params["w3"],
                preferred_element_type=jnp.float32) + params["b3"]
    return jnp.tanh(x) * max_action


def actor_ref_f32(state, params, max_action):
    """Full-f32 reference (sanity check on the bf16 precision trade)."""
    x = jnp.maximum(state @ params["w1"].astype(jnp.float32) + params["b1"], 0.0)
    x = jnp.maximum(x @ params["w2"].astype(jnp.float32) + params["b2"], 0.0)
    return jnp.tanh(x @ params["w3"].astype(jnp.float32) + params["b3"]) * max_action


# --------------------------------------------------------------------------
if __name__ == "__main__":
    key = jax.random.PRNGKey(0)
    k_params, k_state, k_state2 = jax.random.split(key, 3)

    state_dim, action_dim = 16, 4
    max_action = 2.0
    params = init_actor_params(k_params, state_dim, action_dim)

    # 1) Small batch: single full-batch block (grid = 1).
    batch = 8
    state = jax.random.normal(k_state, (batch, state_dim), jnp.float32)
    out = jax.block_until_ready(actor_forward(state, params, max_action))
    assert out.shape == (batch, action_dim)
    ref = actor_ref(state, params, max_action)
    assert jnp.allclose(out, ref, atol=1e-4, rtol=1e-4), "mismatch vs bf16-flow reference"
    ref32 = actor_ref_f32(state, params, max_action)
    assert jnp.allclose(out, ref32, atol=5e-2, rtol=5e-2), "bf16 drift vs f32 reference"

    # 2) Ragged, multi-tile batch: exercises grid = 2 (even, v7x-balanced)
    #    with a partial last block (no wrapper pad/slice).
    batch2 = 270
    state2 = jax.random.normal(k_state2, (batch2, state_dim), jnp.float32)
    out2 = jax.block_until_ready(actor_forward(state2, params, max_action))
    assert out2.shape == (batch2, action_dim)
    ref2 = actor_ref(state2, params, max_action)
    assert jnp.allclose(out2, ref2, atol=1e-4, rtol=1e-4), "mismatch vs reference (tiled path)"

    print("KERNEL_OK")
</pallas_src>

<mosaic_0001>
module attributes {stable_mosaic.version = 11 : i64} {
  func.func @actor_kernel(%arg0: i32, %arg1: memref<8x16xf32, #tpu.memory_space<vmem>>, %arg2: memref<16x256xbf16, #tpu.memory_space<vmem>>, %arg3: memref<1x256xf32, #tpu.memory_space<vmem>>, %arg4: memref<256x128xbf16, #tpu.memory_space<vmem>>, %arg5: memref<1x128xf32, #tpu.memory_space<vmem>>, %arg6: memref<128x4xbf16, #tpu.memory_space<vmem>>, %arg7: memref<1x4xf32, #tpu.memory_space<vmem>>, %arg8: memref<8x4xf32, #tpu.memory_space<vmem>>) attributes {dimension_semantics = [#tpu.dimension_semantics<parallel>], iteration_bounds = array<i64: 1>, scalar_prefetch = 0 : i64, scratch_operands = 0 : i64, tpu.core_type = #tpu.core_type<tc>, window_params = [{transform_indices = @transform_0, window_bounds = array<i64: 8, 16>}, {pipeline_mode = #tpu.pipeline_mode<synchronous>, transform_indices = @transform_1, window_bounds = array<i64: 16, 256>}, {pipeline_mode = #tpu.pipeline_mode<synchronous>, transform_indices = @transform_2, window_bounds = array<i64: 1, 256>}, {pipeline_mode = #tpu.pipeline_mode<synchronous>, transform_indices = @transform_3, window_bounds = array<i64: 256, 128>}, {pipeline_mode = #tpu.pipeline_mode<synchronous>, transform_indices = @transform_4, window_bounds = array<i64: 1, 128>}, {pipeline_mode = #tpu.pipeline_mode<synchronous>, transform_indices = @transform_5, window_bounds = array<i64: 128, 4>}, {pipeline_mode = #tpu.pipeline_mode<synchronous>, transform_indices = @transform_6, window_bounds = array<i64: 1, 4>}, {transform_indices = @transform_7, window_bounds = array<i64: 8, 4>}]} {
    %c0 = arith.constant 0 : index
    %c0_0 = arith.constant 0 : index
    %0 = vector.load %arg1[%c0, %c0_0] : memref<8x16xf32, #tpu.memory_space<vmem>>, vector<8x16xf32>
    %1 = arith.truncf %0 : vector<8x16xf32> to vector<8x16xbf16>
    %c0_1 = arith.constant 0 : index
    %c0_2 = arith.constant 0 : index
    %2 = vector.load %arg2[%c0_1, %c0_2] : memref<16x256xbf16, #tpu.memory_space<vmem>>, vector<16x256xbf16>
    %cst = arith.constant dense<0.000000e+00> : vector<8x256xf32>
    %3 = tpu.matmul %1, %2, %cst {dimension_numbers = #tpu.dot_dimension_numbers<[1], [0], [0], [1], [0, 0, 1, 1], [], []>} : vector<8x16xbf16>, vector<16x256xbf16>, vector<8x256xf32> -> vector<8x256xf32>
    %c0_3 = arith.constant 0 : index
    %c0_4 = arith.constant 0 : index
    %4 = vector.load %arg3[%c0_3, %c0_4] : memref<1x256xf32, #tpu.memory_space<vmem>>, vector<1x256xf32>
    %5 = vector.broadcast %4 : vector<1x256xf32> to vector<8x256xf32>
    %6 = arith.addf %3, %5 : vector<8x256xf32>
    %cst_5 = arith.constant 0.000000e+00 : f32
    %7 = vector.broadcast %cst_5 : f32 to vector<8x256xf32>
    %8 = arith.maximumf %6, %7 : vector<8x256xf32>
    %9 = arith.truncf %8 : vector<8x256xf32> to vector<8x256xbf16>
    %c0_6 = arith.constant 0 : index
    %c0_7 = arith.constant 0 : index
    %10 = vector.load %arg4[%c0_6, %c0_7] : memref<256x128xbf16, #tpu.memory_space<vmem>>, vector<256x128xbf16>
    %cst_8 = arith.constant dense<0.000000e+00> : vector<8x128xf32>
    %11 = tpu.matmul %9, %10, %cst_8 {dimension_numbers = #tpu.dot_dimension_numbers<[1], [0], [0], [1], [0, 0, 1, 1], [], []>} : vector<8x256xbf16>, vector<256x128xbf16>, vector<8x128xf32> -> vector<8x128xf32>
    %c0_9 = arith.constant 0 : index
    %c0_10 = arith.constant 0 : index
    %12 = vector.load %arg5[%c0_9, %c0_10] : memref<1x128xf32, #tpu.memory_space<vmem>>, vector<1x128xf32>
    %13 = vector.broadcast %12 : vector<1x128xf32> to vector<8x128xf32>
    %14 = arith.addf %11, %13 : vector<8x128xf32>
    %cst_11 = arith.constant 0.000000e+00 : f32
    %15 = vector.broadcast %cst_11 : f32 to vector<8x128xf32>
    %16 = arith.maximumf %14, %15 : vector<8x128xf32>
    %17 = arith.truncf %16 : vector<8x128xf32> to vector<8x128xbf16>
    %c0_12 = arith.constant 0 : index
    %c0_13 = arith.constant 0 : index
    %18 = vector.load %arg6[%c0_12, %c0_13] : memref<128x4xbf16, #tpu.memory_space<vmem>>, vector<128x4xbf16>
    %cst_14 = arith.constant dense<0.000000e+00> : vector<8x4xf32>
    %19 = tpu.matmul %17, %18, %cst_14 {dimension_numbers = #tpu.dot_dimension_numbers<[1], [0], [0], [1], [0, 0, 1, 1], [], []>} : vector<8x128xbf16>, vector<128x4xbf16>, vector<8x4xf32> -> vector<8x4xf32>
    %c0_15 = arith.constant 0 : index
    %c0_16 = arith.constant 0 : index
    %20 = vector.load %arg7[%c0_15, %c0_16] : memref<1x4xf32, #tpu.memory_space<vmem>>, vector<1x4xf32>
    %21 = vector.broadcast %20 : vector<1x4xf32> to vector<8x4xf32>
    %22 = arith.addf %19, %21 : vector<8x4xf32>
    %23 = math.tanh %22 : vector<8x4xf32>
    %cst_17 = arith.constant 2.000000e+00 : f32
    %24 = vector.broadcast %cst_17 : f32 to vector<8x4xf32>
    %25 = arith.mulf %23, %24 : vector<8x4xf32>
    %c0_18 = arith.constant 0 : index
    %c0_19 = arith.constant 0 : index
    %26 = vector.load %arg8[%c0_18, %c0_19] : memref<8x4xf32, #tpu.memory_space<vmem>>, vector<8x4xf32>
    tpu.vector_store %arg8[%c0_18, %c0_19], %25 {strides = array<i32>} : memref<8x4xf32, #tpu.memory_space<vmem>>, vector<8x4xf32>,
    return
  }
  func.func @transform_0(%arg0: i32) -> (i32, i32) {
    %c0_i32 = arith.constant 0 : i32
    %c0_i32_0 = arith.constant 0 : i32
    return %arg0, %c0_i32 : i32, i32
  }
  func.func @transform_1(%arg0: i32) -> (i32, i32) {
    %c0_i32 = arith.constant 0 : i32
    %c0_i32_0 = arith.constant 0 : i32
    %c0_i32_1 = arith.constant 0 : i32
    return %c0_i32, %c0_i32_0 : i32, i32
  }
  func.func @transform_2(%arg0: i32) -> (i32, i32) {
    %c0_i32 = arith.constant 0 : i32
    %c0_i32_0 = arith.constant 0 : i32
    %c0_i32_1 = arith.constant 0 : i32
    return %c0_i32, %c0_i32_0 : i32, i32
  }
  func.func @transform_3(%arg0: i32) -> (i32, i32) {
    %c0_i32 = arith.constant 0 : i32
    %c0_i32_0 = arith.constant 0 : i32
    %c0_i32_1 = arith.constant 0 : i32
    return %c0_i32, %c0_i32_0 : i32, i32
  }
  func.func @transform_4(%arg0: i32) -> (i32, i32) {
    %c0_i32 = arith.constant 0 : i32
    %c0_i32_0 = arith.constant 0 : i32
    %c0_i32_1 = arith.constant 0 : i32
    return %c0_i32, %c0_i32_0 : i32, i32
  }
  func.func @transform_5(%arg0: i32) -> (i32, i32) {
    %c0_i32 = arith.constant 0 : i32
    %c0_i32_0 = arith.constant 0 : i32
    %c0_i32_1 = arith.constant 0 : i32
    return %c0_i32, %c0_i32_0 : i32, i32
  }
  func.func @transform_6(%arg0: i32) -> (i32, i32) {
    %c0_i32 = arith.constant 0 : i32
    %c0_i32_0 = arith.constant 0 : i32
    %c0_i32_1 = arith.constant 0 : i32
    return %c0_i32, %c0_i32_0 : i32, i32
  }
  func.func @transform_7(%arg0: i32) -> (i32, i32) {
    %c0_i32 = arith.constant 0 : i32
    %c0_i32_0 = arith.constant 0 : i32
    return %arg0, %c0_i32 : i32, i32
  }
}

</mosaic_0001>

<llo_original>
// kernel: tpu_custom_call.1
$region0: #{tpu_custom_call.1}
  #allocation0 [shape = 'u32[]', space=smem, size = 0x4, offset = 0x4, fixed_abs, tag = 'smem constant byte address 0x4 - core index']
  #allocation1 [shape = 'u32[72,128]{1,0:T(1,128)}', space=vmem, size = 0x9000, scoped, tag = 'internal scratch']
  %s0 = inlined_call_operand.vmem [shape: f32[8,16], index: 0, kind: input, shape index: {}]
  %s1 = inlined_call_operand.vmem [shape: bf16[16,256], index: 1, kind: input, shape index: {}]
  %s2 = inlined_call_operand.vmem [shape: f32[1,256], index: 2, kind: input, shape index: {}]
  %s3 = inlined_call_operand.hbm [shape: bf16[256,128], index: 3, kind: input, shape index: {}]
  %s4 = inlined_call_operand.vmem [shape: f32[1,128], index: 4, kind: input, shape index: {}]
  %s5 = inlined_call_operand.vmem [shape: bf16[128,4], index: 5, kind: input, shape index: {}]
  %s6 = inlined_call_operand.vmem [shape: f32[1,4], index: 6, kind: input, shape index: {}]
  %s7 = inlined_call_operand.vmem [shape: f32[8,4], index: 7, kind: output, shape index: {}]
  %s8 = sld [smem:[#allocation0]]
  $region42: #{tpu_custom_call.1} parent=0
    _
  %s10 = ssub.s32 1, %s8
  %s11 = scalar_select 0, %s10, %s8
  $region1: #{tpu_custom_call.1} parent=0
    #allocation2 [shape = 'u8[65536]{0}', space=vmem, size = 0x10000, scoped, tag = 'input window, operand 3, single buffered']
    #allocation3 [shape = 's32[1]{0}', space=sflag, size = 0x4, scoped, tag = 'scoped memory for tpu_custom_call.1']
    %12 = vsyncpa [#allocation3], 0
    // Predicated region
    $region2: #{tpu_custom_call.1} parent=1 // pred_check
      _
    $region3: #{tpu_custom_call.1} parent=1 // pred_check_branch
      %14 = sbr.rel (0) target = $region5
    $region4: #{tpu_custom_call.1} parent=1 // pred_region
      _
    $region5: #{tpu_custom_call.1} parent=1 // pred_fallthru
      _
    // Predicated region
    $region6: #{tpu_custom_call.1} parent=1 // pred_check
      _
    $region7: #{tpu_custom_call.1} parent=1 // pred_check_branch
      %16 = sbr.rel (0) target = $region9
    $region8: #{tpu_custom_call.1} parent=1 // pred_region
      _
    $region9: #{tpu_custom_call.1} parent=1 // pred_fallthru
      _
    // Predicated region
    $region10: #{tpu_custom_call.1} parent=1 // pred_check
      _
    $region11: #{tpu_custom_call.1} parent=1 // pred_check_branch
      %18 = sbr.rel (0) target = $region13
    $region12: #{tpu_custom_call.1} parent=1 // pred_region
      _
    $region13: #{tpu_custom_call.1} parent=1 // pred_fallthru
      _
    // Predicated region
    $region14: #{tpu_custom_call.1} parent=1 // pred_check
      _
    $region15: #{tpu_custom_call.1} parent=1 // pred_check_branch
      %20 = sbr.rel (0) target = $region17
    $region16: #{tpu_custom_call.1} parent=1 // pred_region
      %22 = vsyncadd [#allocation3], 0
      %s23 = sshll.u32 %s3, 4
      %s24 = int_to_ptr.hbm [resolvable:$true] %s23
      %s25 = sshll.u32 [#allocation2], 4
      %s26 = int_to_ptr.vmem [resolvable:$true] %s25
      %31 = dma.hbm_to_vmem [thread:$0]  %s24, 2048, %s26, [#allocation3], 64, 64, 4
    $region17: #{tpu_custom_call.1} parent=1 // pred_fallthru
      _
    // Predicated region
    $region18: #{tpu_custom_call.1} parent=1 // pred_check
      _
    $region19: #{tpu_custom_call.1} parent=1 // pred_check_branch
      %33 = sbr.rel (0) target = $region21
    $region20: #{tpu_custom_call.1} parent=1 // pred_region
      _
    $region21: #{tpu_custom_call.1} parent=1 // pred_fallthru
      _
    // Predicated region
    $region22: #{tpu_custom_call.1} parent=1 // pred_check
      _
    $region23: #{tpu_custom_call.1} parent=1 // pred_check_branch
      %35 = sbr.rel (0) target = $region25
    $region24: #{tpu_custom_call.1} parent=1 // pred_region
      _
    $region25: #{tpu_custom_call.1} parent=1 // pred_fallthru
      _
    // Predicated region
    $region26: #{tpu_custom_call.1} parent=1 // pred_check
      _
    $region27: #{tpu_custom_call.1} parent=1 // pred_check_branch
      %37 = sbr.rel (0) target = $region29
    $region28: #{tpu_custom_call.1} parent=1 // pred_region
      _
    $region29: #{tpu_custom_call.1} parent=1 // pred_fallthru
      _
    // Predicated region
    $region30: #{tpu_custom_call.1} parent=1 // pred_check
      _
    $region31: #{tpu_custom_call.1} parent=1 // pred_check_branch
      %39 = sbr.rel (0) target = $region33
    $region32: #{tpu_custom_call.1} parent=1 // pred_region
      %41 = dma.done [#allocation3], 2048
    $region33: #{tpu_custom_call.1} parent=1 // pred_fallthru
      _
    %v43 = vld [vmem:[%s0] sm:$0xff]
    %v44 = vpack.c.bf16 %v43, %v43
    %v45 = vld [vmem:[%s1] sm:$0xff]
    %v46 = vld [vmem:[%s1 + $0x8] sm:$0xff]
    %v47 = vld [vmem:[%s2] sm:$0x3]
    %v49 = vperm.slane %v47, 0
    %v50 = vperm.slane %v47, 1
    %v55 = vunpack.c.l.b16 %v45
    %v56 = vunpack.c.h.b16 %v45
    %v57 = vunpack.c.l.b16 %v46
    %v58 = vunpack.c.h.b16 %v46
    %v59 = vpack.c.b16 %v57, %v55
    %v60 = vpack.c.b16 %v58, %v56
    %vm63 = vcmask 130048
    %v65 = vsel %vm63, %v44, 0
    %67 = vmatpush.bf16.msra.mxu0 0
    %68 = vmatpush.bf16.msra.mxu0 0
    %69 = vmatpush.bf16.msra.mxu0 0
    %70 = vmatpush.bf16.msra.mxu0 0
    %71 = vmatpush.bf16.msra.mxu0 0
    %72 = vmatpush.bf16.msra.mxu0 0
    %73 = vmatpush.bf16.msra.mxu0 0
    %74 = vmatpush.bf16.msra.mxu0 %v59
    %75 = vmatmul.bf16.gmra.mxu0 %v65
    %v76 = vpop.f32.mrf.mxu0
    %v77 = vadd.f32 %v49, %v76
    %v78 = vpop.f32.mrf.mxu0
    %79 = vdwg.mxu0
    %80 = vmatpush.bf16.msra.mxu0 0
    %81 = vmatpush.bf16.msra.mxu0 0
    %82 = vmatpush.bf16.msra.mxu0 0
    %83 = vmatpush.bf16.msra.mxu0 0
    %84 = vmatpush.bf16.msra.mxu0 0
    %85 = vmatpush.bf16.msra.mxu0 0
    %86 = vmatpush.bf16.msra.mxu0 0
    %87 = vmatpush.bf16.msra.mxu0 %v60
    %88 = vmatmul.bf16.gmra.mxu0 %v65
    %v89 = vpop.f32.mrf.mxu0
    %v90 = vadd.f32 %v50, %v89
    %v91 = vpop.f32.mrf.mxu0
    %92 = vdwg.mxu0
    %v93 = vmax.f32 %v77, 0.0
    %v94 = vmax.f32 %v90, 0.0
    %v95 = vpack.c.bf16 %v93, %v93
    %v96 = vpack.c.bf16 %v94, %v94
    %v97 = vld [vmem:[#allocation2] sm:$0xf]
    %v98 = vld [vmem:[#allocation2 + $0x4] sm:$0xf]
    %v99 = vld [vmem:[#allocation2 + $0x8] sm:$0xf]
    %v100 = vld [vmem:[#allocation2 + $0xc] sm:$0xf]
    %v101 = vld [vmem:[#allocation2 + $0x10] sm:$0xf]
    %v102 = vld [vmem:[#allocation2 + $0x14] sm:$0xf]
    %v103 = vld [vmem:[#allocation2 + $0x18] sm:$0xf]
    %v104 = vld [vmem:[#allocation2 + $0x1c] sm:$0xf]
    %v105 = vld [vmem:[#allocation2 + $0x20] sm:$0xf]
    %v106 = vld [vmem:[#allocation2 + $0x24] sm:$0xf]
    %v107 = vld [vmem:[#allocation2 + $0x28] sm:$0xf]
    %v108 = vld [vmem:[#allocation2 + $0x2c] sm:$0xf]
    %v109 = vld [vmem:[#allocation2 + $0x30] sm:$0xf]
    %v110 = vld [vmem:[#allocation2 + $0x34] sm:$0xf]
    %v111 = vld [vmem:[#allocation2 + $0x38] sm:$0xf]
    %v112 = vld [vmem:[#allocation2 + $0x3c] sm:$0xf]
    %v113 = vld [vmem:[#allocation2 + $0x40] sm:$0xf]
    %v114 = vld [vmem:[#allocation2 + $0x44] sm:$0xf]
    %v115 = vld [vmem:[#allocation2 + $0x48] sm:$0xf]
    %v116 = vld [vmem:[#allocation2 + $0x4c] sm:$0xf]
    %v117 = vld [vmem:[#allocation2 + $0x50] sm:$0xf]
    %v118 = vld [vmem:[#allocation2 + $0x54] sm:$0xf]
    %v119 = vld [vmem:[#allocation2 + $0x58] sm:$0xf]
    %v120 = vld [vmem:[#allocation2 + $0x5c] sm:$0xf]
    %v121 = vld [vmem:[#allocation2 + $0x60] sm:$0xf]
    %v122 = vld [vmem:[#allocation2 + $0x64] sm:$0xf]
    %v123 = vld [vmem:[#allocation2 + $0x68] sm:$0xf]
    %v124 = vld [vmem:[#allocation2 + $0x6c] sm:$0xf]
    %v125 = vld [vmem:[#allocation2 + $0x70] sm:$0xf]
    %v126 = vld [vmem:[#allocation2 + $0x74] sm:$0xf]
    %v127 = vld [vmem:[#allocation2 + $0x78] sm:$0xf]
    %v128 = vld [vmem:[#allocation2 + $0x7c] sm:$0xf]
    %v129 = vld [vmem:[%s4] sm:$0x1]
    %v131 = vperm.slane %v129, 0
    %v165 = vunpack.c.l.b16 %v97
    %v166 = vunpack.c.l.b16 %v98
    %v167 = vunpack.c.l.b16 %v99
    %v168 = vunpack.c.l.b16 %v100
    %v169 = vunpack.c.l.b16 %v101
    %v170 = vunpack.c.l.b16 %v102
    %v171 = vunpack.c.l.b16 %v103
    %v172 = vunpack.c.l.b16 %v104
    %v173 = vunpack.c.l.b16 %v105
    %v174 = vunpack.c.l.b16 %v106
    %v175 = vunpack.c.l.b16 %v107
    %v176 = vunpack.c.l.b16 %v108
    %v177 = vunpack.c.l.b16 %v109
    %v178 = vunpack.c.l.b16 %v110
    %v179 = vunpack.c.l.b16 %v111
    %v180 = vunpack.c.l.b16 %v112
    %v181 = vunpack.c.l.b16 %v113
    %v182 = vunpack.c.l.b16 %v114
    %v183 = vunpack.c.l.b16 %v115
    %v184 = vunpack.c.l.b16 %v116
    %v185 = vunpack.c.l.b16 %v117
    %v186 = vunpack.c.l.b16 %v118
    %v187 = vunpack.c.l.b16 %v119
    %v188 = vunpack.c.l.b16 %v120
    %v189 = vunpack.c.l.b16 %v121
    %v190 = vunpack.c.l.b16 %v122
    %v191 = vunpack.c.l.b16 %v123
    %v192 = vunpack.c.l.b16 %v124
    %v193 = vunpack.c.l.b16 %v125
    %v194 = vunpack.c.l.b16 %v126
    %v195 = vunpack.c.l.b16 %v127
    %v196 = vunpack.c.l.b16 %v128
    %v197 = vpack.c.b16 %v166, %v165
    %v198 = vpack.c.b16 %v168, %v167
    %v199 = vpack.c.b16 %v170, %v169
    %v200 = vpack.c.b16 %v172, %v171
    %v201 = vpack.c.b16 %v174, %v173
    %v202 = vpack.c.b16 %v176, %v175
    %v203 = vpack.c.b16 %v178, %v177
    %v204 = vpack.c.b16 %v180, %v179
    %v205 = vpack.c.b16 %v182, %v181
    %v206 = vpack.c.b16 %v184, %v183
    %v207 = vpack.c.b16 %v186, %v185
    %v208 = vpack.c.b16 %v188, %v187
    %v209 = vpack.c.b16 %v190, %v189
    %v210 = vpack.c.b16 %v192, %v191
    %v211 = vpack.c.b16 %v194, %v193
    %v212 = vpack.c.b16 %v196, %v195
    %229 = vmatpush.bf16.msra.mxu0 %v204
    %230 = vmatpush.bf16.msra.mxu0 %v203
    %231 = vmatpush.bf16.msra.mxu0 %v202
    %232 = vmatpush.bf16.msra.mxu0 %v201
    %233 = vmatpush.bf16.msra.mxu0 %v200
    %234 = vmatpush.bf16.msra.mxu0 %v199
    %235 = vmatpush.bf16.msra.mxu0 %v198
    %236 = vmatpush.bf16.msra.mxu0 %v197
    %237 = vmatmul.bf16.gmra.mxu0 %v95
    %v238 = vpop.f32.mrf.mxu0
    %v239 = vadd.f32 %v131, %v238
    %v240 = vpop.f32.mrf.mxu0
    %241 = vdwg.mxu0
    %242 = vmatpush.bf16.msra.mxu0 %v212
    %243 = vmatpush.bf16.msra.mxu0 %v211
    %244 = vmatpush.bf16.msra.mxu0 %v210
    %245 = vmatpush.bf16.msra.mxu0 %v209
    %246 = vmatpush.bf16.msra.mxu0 %v208
    %247 = vmatpush.bf16.msra.mxu0 %v207
    %248 = vmatpush.bf16.msra.mxu0 %v206
    %249 = vmatpush.bf16.msra.mxu0 %v205
    %250 = vmatmul.bf16.gmra.mxu0 %v96
    %v251 = vpop.f32.mrf.mxu0
    %v252 = vadd.f32 %v239, %v251
    %v253 = vpop.f32.mrf.mxu0
    %254 = vdwg.mxu0
    %v255 = vmax.f32 %v252, 0.0
    %v256 = vpack.c.bf16 %v255, %v255
    %v257 = vld [vmem:[%s5] sm:$0xf]
    %v258 = vld [vmem:[%s5 + $0x4] sm:$0xf]
    %v259 = vld [vmem:[%s5 + $0x8] sm:$0xf]
    %v260 = vld [vmem:[%s5 + $0xc] sm:$0xf]
    %v261 = vld [vmem:[%s5 + $0x10] sm:$0xf]
    %v262 = vld [vmem:[%s5 + $0x14] sm:$0xf]
    %v263 = vld [vmem:[%s5 + $0x18] sm:$0xf]
    %v264 = vld [vmem:[%s5 + $0x1c] sm:$0xf]
    %v265 = vld [vmem:[%s5 + $0x20] sm:$0xf]
    %v266 = vld [vmem:[%s5 + $0x24] sm:$0xf]
    %v267 = vld [vmem:[%s5 + $0x28] sm:$0xf]
    %v268 = vld [vmem:[%s5 + $0x2c] sm:$0xf]
    %v269 = vld [vmem:[%s5 + $0x30] sm:$0xf]
    %v270 = vld [vmem:[%s5 + $0x34] sm:$0xf]
    %v271 = vld [vmem:[%s5 + $0x38] sm:$0xf]
    %v272 = vld [vmem:[%s5 + $0x3c] sm:$0xf]
    %v273 = vld [vmem:[%s6] sm:$0x1]
    %v275 = vperm.slane %v273, 0
    %v293 = vunpack.c.l.b16 %v257
    %v294 = vunpack.c.l.b16 %v258
    %v295 = vunpack.c.l.b16 %v259
    %v296 = vunpack.c.l.b16 %v260
    %v297 = vunpack.c.l.b16 %v261
    %v298 = vunpack.c.l.b16 %v262
    %v299 = vunpack.c.l.b16 %v263
    %v300 = vunpack.c.l.b16 %v264
    %v301 = vunpack.c.l.b16 %v265
    %v302 = vunpack.c.l.b16 %v266
    %v303 = vunpack.c.l.b16 %v267
    %v304 = vunpack.c.l.b16 %v268
    %v305 = vunpack.c.l.b16 %v269
    %v306 = vunpack.c.l.b16 %v270
    %v307 = vunpack.c.l.b16 %v271
    %v308 = vunpack.c.l.b16 %v272
    %v309 = vpack.c.b16 %v294, %v293
    %v310 = vpack.c.b16 %v296, %v295
    %v311 = vpack.c.b16 %v298, %v297
    %v312 = vpack.c.b16 %v300, %v299
    %v313 = vpack.c.b16 %v302, %v301
    %v314 = vpack.c.b16 %v304, %v303
    %v315 = vpack.c.b16 %v306, %v305
    %v316 = vpack.c.b16 %v308, %v307
    %325 = vmatpush.bf16.msra.mxu0 %v316
    %326 = vmatpush.bf16.msra.mxu0 %v315
    %327 = vmatpush.bf16.msra.mxu0 %v314
    %328 = vmatpush.bf16.msra.mxu0 %v313
    %329 = vmatpush.bf16.msra.mxu0 %v312
    %330 = vmatpush.bf16.msra.mxu0 %v311
    %331 = vmatpush.bf16.msra.mxu0 %v310
    %332 = vmatpush.bf16.msra.mxu0 %v309
    %333 = vmatmul.bf16.gmra.mxu0 %v256
    %v334 = vpop.f32.mrf.mxu0
    %v335 = vadd.f32 %v275, %v334
    %v336 = vpop.f32.mrf.mxu0
    %337 = vdwg.mxu0
    %v338 = vtanh.pop %v335
    %v339 = vmul.f32 %v338, 2.0
    %vm340 = vcmask 31744
    %341 = vst.msk [vmem:[%s7] sm:$0xff] %vm340, %v339
    // Predicated region
    $region34: #{tpu_custom_call.1} parent=1 // pred_check
      _
    $region35: #{tpu_custom_call.1} parent=1 // pred_check_branch
      %343 = sbr.rel (0) target = $region37
    $region36: #{tpu_custom_call.1} parent=1 // pred_region
      _
    $region37: #{tpu_custom_call.1} parent=1 // pred_fallthru
      _
    // Predicated region
    $region38: #{tpu_custom_call.1} parent=1 // pred_check
      _
    $region39: #{tpu_custom_call.1} parent=1 // pred_check_branch
      %345 = sbr.rel (0) target = $region41
    $region40: #{tpu_custom_call.1} parent=1 // pred_region
      _
    $region41: #{tpu_custom_call.1} parent=1 // pred_fallthru
      _
    %346 = vsyncpa [#allocation3], 1

</llo_original>
